<compile_context>
chip_gen: v7x
topology: tpu7x:2x2x1
jax: 0.10.0
libtpu: 0.0.40
codegen_flags: <defaults>
</compile_context>

<pallas_src>
import functools

import jax
import jax.numpy as jnp
from jax.experimental import pallas as pl
from jax.experimental.pallas import tpu as pltpu


_CHUNK = 1024       # lanes per in-kernel compute sub-chunk
_MAX_LANES = 32768  # cap on l_block (bounds the sub-chunk loop trip count)


def _pe_superglue_kernel(x_ref, w1x_ref, w1y_ref, b1_ref, w2_ref, b2_ref,
                         w3_ref, b3_ref, o_ref, *, height, width, l_block,
                         chunk):
    # x_ref / o_ref: (1, C, l_block) tiles; weight refs are small full arrays.
    f32 = jnp.float32
    c_out = o_ref.shape[1]
    c1 = w1x_ref.shape[0]
    c2 = w2_ref.shape[0]
    out_dtype = o_ref.dtype
    out_is_f32 = jnp.dtype(out_dtype) == jnp.dtype(jnp.float32)

    w_f = float(width)
    inv_w = 1.0 / w_f
    inv_scale = 1.0 / (0.7 * float(max(width, height)))   # normalize_keypoints
    cx, cy = 0.5 * float(width), 0.5 * float(height)

    # First flattened-position index of this block (exact in f32 for L < 2^24).
    base = (pl.program_id(1) * l_block).astype(f32)

    w1x = w1x_ref[...]                      # (32, 1)  f32
    w1y = w1y_ref[...]                      # (32, 1)  f32
    w2 = w2_ref[...]                        # (64, 32) bf16
    w3 = w3_ref[...]                        # (C, 64)  bf16

    def compute_pe(lane0, size, b1b, b2b, b3b):
        lane = lane0 + jax.lax.broadcasted_iota(jnp.int32, (1, size), 1).astype(f32)
        # float divmod by `width` with a one-step correction (exact, VPU-only).
        q = jnp.floor(lane * inv_w)
        r = lane - q * w_f
        q = q + jnp.where(r >= w_f, 1.0, 0.0) - jnp.where(r < 0.0, 1.0, 0.0)
        xc = lane - q * w_f                 # 0-based column index
        yc = q                              # 0-based row index
        xn = (xc - cx) * inv_scale
        yn = (yc - cy) * inv_scale
        # Layer 1: Conv1d(2 -> 32) + folded BN + ReLU (VPU broadcast multiplies).
        h1 = jnp.maximum(w1x * xn + w1y * yn + b1b, 0.0)            # (32, size)
        # Layer 2: Conv1d(32 -> 64) + folded BN + ReLU (MXU, bf16 in / f32 acc).
        h2 = jnp.dot(w2, h1.astype(jnp.bfloat16),
                     preferred_element_type=f32) + b2b               # (64, size)
        h2 = jnp.maximum(h2, 0.0)
        # Layer 3: Conv1d(64 -> C); bias initialised to 0 in the module.
        return jnp.dot(w3, h2.astype(jnp.bfloat16),
                       preferred_element_type=f32) + b3b             # (C, size)

    def store_chunk(start, size, b1b, b2b, b3b):
        lane0 = base + jax.lax.convert_element_type(start, f32)
        pe = compute_pe(lane0, size, b1b, b2b, b3b)
        sl = pl.ds(start, size)
        x_chunk = x_ref[0, :, sl]                                    # (C, size)
        if out_is_f32:
            res = x_chunk + pe
        else:
            res = x_chunk + pe.astype(out_dtype)   # single cast; add in x dtype
        o_ref[0, :, sl] = res.astype(out_dtype)

    n_full = l_block // chunk
    rem = l_block - n_full * chunk

    # Hoisted bias broadcasts for the full-size chunks (broadcast_in_dim is not
    # CSE'd by JAX; keep it out of the loop body).
    b1f = jnp.broadcast_to(b1_ref[...], (c1, chunk))
    b2f = jnp.broadcast_to(b2_ref[...], (c2, chunk))
    b3f = jnp.broadcast_to(b3_ref[...], (c_out, chunk))

    if n_full == 1:
        store_chunk(0, chunk, b1f, b2f, b3f)
    else:
        def body(c, carry):
            start = pl.multiple_of(c * chunk, 128)
            store_chunk(start, chunk, b1f, b2f, b3f)
            return carry
        jax.lax.fori_loop(0, n_full, body, None, unroll=(n_full <= 8))

    if rem > 0:
        b1r = jnp.broadcast_to(b1_ref[...], (c1, rem))
        b2r = jnp.broadcast_to(b2_ref[...], (c2, rem))
        b3r = jnp.broadcast_to(b3_ref[...], (c_out, rem))
        store_chunk(n_full * chunk, rem, b1r, b2r, b3r)


def _fold_bn(w, b, gamma, beta, mean, var, eps):
    """Fold an inference-mode BatchNorm1d into the preceding Conv1d(k=1)."""
    s = gamma / jnp.sqrt(var + eps)
    return w * s[:, None], (b - mean) * s + beta


def position_encoding_superglue(x, params, *, eps=1e-5,
                                target_block_bytes=2 * 1024 * 1024,
                                vmem_limit_bytes=None):
    """x: (N, C, H, W).  Returns x + KeypointEncoder(normalized pixel coords)."""
    N, C, H, W = x.shape
    L = H * W
    assert L < 2 ** 24, "f32 coordinate math requires H*W < 2**24"
    x_flat = x.reshape(N, C, L)

    # Fold BN (eval mode, running stats) into the first two convolutions.
    w1, b1 = _fold_bn(params['w1'], params['b1'], params['g1'], params['be1'],
                      params['m1'], params['v1'], eps)
    w2, b2 = _fold_bn(params['w2'], params['b2'], params['g2'], params['be2'],
                      params['m2'], params['v2'], eps)
    w3, b3 = params['w3'], params['b3']

    f32, bf16 = jnp.float32, jnp.bfloat16
    w1x = w1[:, 0:1].astype(f32)          # (32, 1)
    w1y = w1[:, 1:2].astype(f32)          # (32, 1)
    b1c = b1.astype(f32)[:, None]         # (32, 1)
    w2c = w2.astype(bf16)                 # (64, 32) bf16 -> single-pass MXU
    b2c = b2.astype(f32)[:, None]         # (64, 1)
    w3c = w3.astype(bf16)                 # (C, 64)  bf16 -> single-pass MXU
    b3c = b3.astype(f32)[:, None]         # (C, 1)

    C1, C2 = w1x.shape[0], w2c.shape[0]

    # ---- block sizing: double-buffered x in/out tiles + per-chunk f32/bf16
    #      intermediates + (padded) weights must fit the scoped VMEM default. ----
    itemsize = jnp.dtype(x.dtype).itemsize
    chunk0 = min(_CHUNK, L)
    per_chunk = chunk0 * 4 * (2 + C1 + C2 + C) + chunk0 * 2 * (C1 + C2)
    weights_bytes = 4 * 128 * (4 * C1 + 3 * C2 + 2 * max(C, 8))
    budget = (vmem_limit_bytes if vmem_limit_bytes is not None
              else 14 * 1024 * 1024)       # below the 16 MiB v5e scoped default
    per_lane = 4 * C * itemsize            # x in + out, each double-buffered
    avail = max(budget - per_chunk - weights_bytes, 128 * per_lane)
    lanes = min(target_block_bytes // max(1, C * itemsize),
                avail // per_lane, _MAX_LANES)
    lanes = max(128, (lanes // 128) * 128)

    if L <= lanes:
        l_block = L
    else:
        l_block = lanes
        for cand in range(lanes, 127, -128):   # prefer a divisor of L: no ragged
            if L % cand == 0:                  # tail / masked partial stores
                l_block = cand
                break

    # v7x has two TensorCores: keep the total grid step count even when cheap.
    n_lblk = pl.cdiv(L, l_block)
    if (N * n_lblk) % 2 == 1 and L >= 256:
        cand = ((L + n_lblk) // (n_lblk + 1) + 127) // 128 * 128
        if 128 <= cand <= lanes and (N * pl.cdiv(L, cand)) % 2 == 0:
            l_block = cand
            n_lblk = pl.cdiv(L, l_block)

    chunk = min(_CHUNK, l_block)
    grid = (N, n_lblk)

    kernel = functools.partial(_pe_superglue_kernel, height=H, width=W,
                               l_block=l_block, chunk=chunk)

    cp = dict(dimension_semantics=("parallel", "parallel"))
    if vmem_limit_bytes is not None:
        cp["vmem_limit_bytes"] = int(vmem_limit_bytes)

    out_flat = pl.pallas_call(
        kernel,
        out_shape=jax.ShapeDtypeStruct((N, C, L), x.dtype),
        grid=grid,
        in_specs=[
            pl.BlockSpec((1, C, l_block), lambda n, j: (n, 0, j)),
            pl.BlockSpec(w1x.shape, lambda n, j: (0, 0)),
            pl.BlockSpec(w1y.shape, lambda n, j: (0, 0)),
            pl.BlockSpec(b1c.shape, lambda n, j: (0, 0)),
            pl.BlockSpec(w2c.shape, lambda n, j: (0, 0)),
            pl.BlockSpec(b2c.shape, lambda n, j: (0, 0)),
            pl.BlockSpec(w3c.shape, lambda n, j: (0, 0)),
            pl.BlockSpec(b3c.shape, lambda n, j: (0, 0)),
        ],
        out_specs=pl.BlockSpec((1, C, l_block), lambda n, j: (n, 0, j)),
        compiler_params=pltpu.CompilerParams(**cp),
    )(x_flat, w1x, w1y, b1c, w2c, b2c, w3c, b3c)

    return out_flat.reshape(N, C, H, W)


# ----------------------------------------------------------------------------
# Deterministic parameter construction + pure-JAX reference for verification.
# ----------------------------------------------------------------------------
def init_params(key, d_model):
    ks = jax.random.split(key, 13)
    p = {}
    p['w1'] = 0.5 * jax.random.normal(ks[0], (32, 2), jnp.float32)
    p['b1'] = 0.1 * jax.random.normal(ks[1], (32,), jnp.float32)
    p['g1'] = 1.0 + 0.1 * jax.random.normal(ks[2], (32,), jnp.float32)
    p['be1'] = 0.1 * jax.random.normal(ks[3], (32,), jnp.float32)
    p['m1'] = 0.1 * jax.random.normal(ks[4], (32,), jnp.float32)
    p['v1'] = jax.random.uniform(ks[5], (32,), jnp.float32, 0.5, 1.5)
    p['w2'] = 0.2 * jax.random.normal(ks[6], (64, 32), jnp.float32)
    p['b2'] = 0.1 * jax.random.normal(ks[7], (64,), jnp.float32)
    p['g2'] = 1.0 + 0.1 * jax.random.normal(ks[8], (64,), jnp.float32)
    p['be2'] = 0.1 * jax.random.normal(ks[9], (64,), jnp.float32)
    p['m2'] = 0.1 * jax.random.normal(ks[10], (64,), jnp.float32)
    p['v2'] = jax.random.uniform(ks[11], (64,), jnp.float32, 0.5, 1.5)
    p['w3'] = 0.2 * jax.random.normal(ks[12], (d_model, 64), jnp.float32)
    p['b3'] = jnp.zeros((d_model,), jnp.float32)   # nn.init.constant_(bias, 0)
    return p


def _reference(x, p, eps=1e-5):
    """Direct JAX transcription of the PyTorch forward (BN in eval mode)."""
    N, C, H, W = x.shape
    L = H * W
    ys = jnp.cumsum(jnp.ones((H, W), jnp.float32), axis=0)
    xs = jnp.cumsum(jnp.ones((H, W), jnp.float32), axis=1)
    xy = jnp.stack([xs, ys], axis=0) - 1.0                      # (2, H, W): [x, y]
    kpts = jnp.broadcast_to(xy.reshape(2, L).T[None], (N, L, 2))
    size = jnp.array([W, H], jnp.float32)
    center = size / 2.0
    scaling = jnp.max(size) * 0.7
    kn = (kpts - center) / scaling                              # (N, L, 2)
    h = jnp.transpose(kn, (0, 2, 1))                            # (N, 2, L)

    def conv(h, w, b):
        return jnp.einsum('oc,ncl->nol', w, h) + b[None, :, None]

    def bn(h, gamma, beta, mean, var):
        return (gamma[None, :, None] * (h - mean[None, :, None])
                / jnp.sqrt(var[None, :, None] + eps) + beta[None, :, None])

    h = conv(h, p['w1'], p['b1'])
    h = jax.nn.relu(bn(h, p['g1'], p['be1'], p['m1'], p['v1']))
    h = conv(h, p['w2'], p['b2'])
    h = jax.nn.relu(bn(h, p['g2'], p['be2'], p['m2'], p['v2']))
    h = conv(h, p['w3'], p['b3'])
    return x + h.reshape(N, C, H, W).astype(x.dtype)


if __name__ == "__main__":
    key = jax.random.PRNGKey(0)
    k_x, k_p = jax.random.split(key)

    N, C, H, W = 2, 8, 16, 16          # d_model = C
    x = jax.random.normal(k_x, (N, C, H, W), dtype=jnp.float32)
    params = init_params(k_p, C)

    out = jax.block_until_ready(position_encoding_superglue(x, params))
    ref = jax.block_until_ready(_reference(x, params))

    assert out.shape == x.shape and out.dtype == x.dtype
    max_err = float(jnp.max(jnp.abs(out - ref)))
    # Layers 2/3 use bf16 MXU inputs with f32 accumulation -> loose tolerance.
    assert max_err < 5e-2, f"mismatch vs reference: max abs err = {max_err}"

    print("KERNEL_OK")
</pallas_src>

<mosaic_0001>
module attributes {stable_mosaic.version = 11 : i64} {
  func.func @_pe_superglue_kernel(%arg0: i32, %arg1: i32, %arg2: memref<1x8x256xf32, #tpu.memory_space<vmem>>, %arg3: memref<32x1xf32, #tpu.memory_space<vmem>>, %arg4: memref<32x1xf32, #tpu.memory_space<vmem>>, %arg5: memref<32x1xf32, #tpu.memory_space<vmem>>, %arg6: memref<64x32xbf16, #tpu.memory_space<vmem>>, %arg7: memref<64x1xf32, #tpu.memory_space<vmem>>, %arg8: memref<8x64xbf16, #tpu.memory_space<vmem>>, %arg9: memref<8x1xf32, #tpu.memory_space<vmem>>, %arg10: memref<1x8x256xf32, #tpu.memory_space<vmem>>) attributes {dimension_semantics = [#tpu.dimension_semantics<parallel>, #tpu.dimension_semantics<parallel>], iteration_bounds = array<i64: 2, 1>, scalar_prefetch = 0 : i64, scratch_operands = 0 : i64, tpu.core_type = #tpu.core_type<tc>, window_params = [{transform_indices = @transform_0, window_bounds = array<i64: 1, 8, 256>}, {pipeline_mode = #tpu.pipeline_mode<synchronous>, transform_indices = @transform_1, window_bounds = array<i64: 32, 1>}, {pipeline_mode = #tpu.pipeline_mode<synchronous>, transform_indices = @transform_2, window_bounds = array<i64: 32, 1>}, {pipeline_mode = #tpu.pipeline_mode<synchronous>, transform_indices = @transform_3, window_bounds = array<i64: 32, 1>}, {pipeline_mode = #tpu.pipeline_mode<synchronous>, transform_indices = @transform_4, window_bounds = array<i64: 64, 32>}, {pipeline_mode = #tpu.pipeline_mode<synchronous>, transform_indices = @transform_5, window_bounds = array<i64: 64, 1>}, {pipeline_mode = #tpu.pipeline_mode<synchronous>, transform_indices = @transform_6, window_bounds = array<i64: 8, 64>}, {pipeline_mode = #tpu.pipeline_mode<synchronous>, transform_indices = @transform_7, window_bounds = array<i64: 8, 1>}, {transform_indices = @transform_8, window_bounds = array<i64: 1, 8, 256>}]} {
    %c256_i32 = arith.constant 256 : i32
    %0 = arith.muli %arg1, %c256_i32 : i32
    %1 = arith.sitofp %0 : i32 to f32
    %c0 = arith.constant 0 : index
    %c0_0 = arith.constant 0 : index
    %2 = vector.load %arg3[%c0, %c0_0] : memref<32x1xf32, #tpu.memory_space<vmem>>, vector<32x1xf32>
    %c0_1 = arith.constant 0 : index
    %c0_2 = arith.constant 0 : index
    %3 = vector.load %arg4[%c0_1, %c0_2] : memref<32x1xf32, #tpu.memory_space<vmem>>, vector<32x1xf32>
    %c0_3 = arith.constant 0 : index
    %c0_4 = arith.constant 0 : index
    %4 = vector.load %arg6[%c0_3, %c0_4] : memref<64x32xbf16, #tpu.memory_space<vmem>>, vector<64x32xbf16>
    %c0_5 = arith.constant 0 : index
    %c0_6 = arith.constant 0 : index
    %5 = vector.load %arg8[%c0_5, %c0_6] : memref<8x64xbf16, #tpu.memory_space<vmem>>, vector<8x64xbf16>
    %c0_7 = arith.constant 0 : index
    %c0_8 = arith.constant 0 : index
    %6 = vector.load %arg5[%c0_7, %c0_8] : memref<32x1xf32, #tpu.memory_space<vmem>>, vector<32x1xf32>
    %7 = vector.shape_cast %6 : vector<32x1xf32> to vector<32x1xf32>
    %8 = vector.broadcast %7 : vector<32x1xf32> to vector<32x256xf32>
    %c0_9 = arith.constant 0 : index
    %c0_10 = arith.constant 0 : index
    %9 = vector.load %arg7[%c0_9, %c0_10] : memref<64x1xf32, #tpu.memory_space<vmem>>, vector<64x1xf32>
    %10 = vector.shape_cast %9 : vector<64x1xf32> to vector<64x1xf32>
    %11 = vector.broadcast %10 : vector<64x1xf32> to vector<64x256xf32>
    %c0_11 = arith.constant 0 : index
    %c0_12 = arith.constant 0 : index
    %12 = vector.load %arg9[%c0_11, %c0_12] : memref<8x1xf32, #tpu.memory_space<vmem>>, vector<8x1xf32>
    %13 = vector.shape_cast %12 : vector<8x1xf32> to vector<8x1xf32>
    %14 = vector.broadcast %13 : vector<8x1xf32> to vector<8x256xf32>
    %cst = arith.constant 0.000000e+00 : f32
    %15 = arith.addf %1, %cst : f32
    %16 = tpu.iota {dimensions = array<i32: 1>} : vector<1x256xi32>
    %17 = arith.sitofp %16 : vector<1x256xi32> to vector<1x256xf32>
    %18 = vector.broadcast %15 : f32 to vector<1x256xf32>
    %19 = arith.addf %18, %17 : vector<1x256xf32>
    %cst_13 = arith.constant 6.250000e-02 : f32
    %20 = vector.broadcast %cst_13 : f32 to vector<1x256xf32>
    %21 = arith.mulf %19, %20 : vector<1x256xf32>
    %22 = math.floor %21 : vector<1x256xf32>
    %cst_14 = arith.constant 1.600000e+01 : f32
    %23 = vector.broadcast %cst_14 : f32 to vector<1x256xf32>
    %24 = arith.mulf %22, %23 : vector<1x256xf32>
    %25 = arith.subf %19, %24 : vector<1x256xf32>
    %cst_15 = arith.constant 1.600000e+01 : f32
    %26 = vector.broadcast %cst_15 : f32 to vector<1x256xf32>
    %27 = arith.cmpf oge, %25, %26 : vector<1x256xf32>
    %cst_16 = arith.constant 1.000000e+00 : f32
    %cst_17 = arith.constant 0.000000e+00 : f32
    %28 = vector.broadcast %cst_16 : f32 to vector<1x256xf32>
    %29 = vector.broadcast %cst_17 : f32 to vector<1x256xf32>
    %30 = arith.select %27, %28, %29 : vector<1x256xi1>, vector<1x256xf32>
    %31 = arith.addf %22, %30 : vector<1x256xf32>
    %cst_18 = arith.constant 0.000000e+00 : f32
    %32 = vector.broadcast %cst_18 : f32 to vector<1x256xf32>
    %33 = arith.cmpf olt, %25, %32 : vector<1x256xf32>
    %cst_19 = arith.constant 1.000000e+00 : f32
    %cst_20 = arith.constant 0.000000e+00 : f32
    %34 = vector.broadcast %cst_19 : f32 to vector<1x256xf32>
    %35 = vector.broadcast %cst_20 : f32 to vector<1x256xf32>
    %36 = arith.select %33, %34, %35 : vector<1x256xi1>, vector<1x256xf32>
    %37 = arith.subf %31, %36 : vector<1x256xf32>
    %cst_21 = arith.constant 1.600000e+01 : f32
    %38 = vector.broadcast %cst_21 : f32 to vector<1x256xf32>
    %39 = arith.mulf %37, %38 : vector<1x256xf32>
    %40 = arith.subf %19, %39 : vector<1x256xf32>
    %cst_22 = arith.constant 8.000000e+00 : f32
    %41 = vector.broadcast %cst_22 : f32 to vector<1x256xf32>
    %42 = arith.subf %40, %41 : vector<1x256xf32>
    %cst_23 = arith.constant 0.0892857164 : f32
    %43 = vector.broadcast %cst_23 : f32 to vector<1x256xf32>
    %44 = arith.mulf %42, %43 : vector<1x256xf32>
    %cst_24 = arith.constant 8.000000e+00 : f32
    %45 = vector.broadcast %cst_24 : f32 to vector<1x256xf32>
    %46 = arith.subf %37, %45 : vector<1x256xf32>
    %cst_25 = arith.constant 0.0892857164 : f32
    %47 = vector.broadcast %cst_25 : f32 to vector<1x256xf32>
    %48 = arith.mulf %46, %47 : vector<1x256xf32>
    %49 = vector.broadcast %2 : vector<32x1xf32> to vector<32x256xf32>
    %50 = vector.broadcast %44 : vector<1x256xf32> to vector<32x256xf32>
    %51 = arith.mulf %49, %50 : vector<32x256xf32>
    %52 = vector.broadcast %3 : vector<32x1xf32> to vector<32x256xf32>
    %53 = vector.broadcast %48 : vector<1x256xf32> to vector<32x256xf32>
    %54 = arith.mulf %52, %53 : vector<32x256xf32>
    %55 = arith.addf %51, %54 : vector<32x256xf32>
    %56 = arith.addf %55, %8 : vector<32x256xf32>
    %cst_26 = arith.constant 0.000000e+00 : f32
    %57 = vector.broadcast %cst_26 : f32 to vector<32x256xf32>
    %58 = arith.maximumf %56, %57 : vector<32x256xf32>
    %59 = arith.truncf %58 : vector<32x256xf32> to vector<32x256xbf16>
    %cst_27 = arith.constant dense<0.000000e+00> : vector<64x256xf32>
    %60 = tpu.matmul %4, %59, %cst_27 {dimension_numbers = #tpu.dot_dimension_numbers<[1], [0], [0], [1], [0, 0, 1, 1], [], []>} : vector<64x32xbf16>, vector<32x256xbf16>, vector<64x256xf32> -> vector<64x256xf32>
    %61 = arith.addf %60, %11 : vector<64x256xf32>
    %cst_28 = arith.constant 0.000000e+00 : f32
    %62 = vector.broadcast %cst_28 : f32 to vector<64x256xf32>
    %63 = arith.maximumf %61, %62 : vector<64x256xf32>
    %64 = arith.truncf %63 : vector<64x256xf32> to vector<64x256xbf16>
    %cst_29 = arith.constant dense<0.000000e+00> : vector<8x256xf32>
    %65 = tpu.matmul %5, %64, %cst_29 {dimension_numbers = #tpu.dot_dimension_numbers<[1], [0], [0], [1], [0, 0, 1, 1], [], []>} : vector<8x64xbf16>, vector<64x256xbf16>, vector<8x256xf32> -> vector<8x256xf32>
    %66 = arith.addf %65, %14 : vector<8x256xf32>
    %c0_30 = arith.constant 0 : index
    %c0_31 = arith.constant 0 : index
    %c0_32 = arith.constant 0 : index
    %67 = vector.load %arg2[%c0_30, %c0_31, %c0_32] : memref<1x8x256xf32, #tpu.memory_space<vmem>>, vector<1x8x256xf32>
    %68 = vector.shape_cast %67 : vector<1x8x256xf32> to vector<8x256xf32>
    %69 = arith.addf %68, %66 : vector<8x256xf32>
    %c0_33 = arith.constant 0 : index
    %c0_34 = arith.constant 0 : index
    %c0_35 = arith.constant 0 : index
    %70 = vector.load %arg10[%c0_33, %c0_34, %c0_35] : memref<1x8x256xf32, #tpu.memory_space<vmem>>, vector<1x8x256xf32>
    %71 = vector.shape_cast %70 : vector<1x8x256xf32> to vector<8x256xf32>
    %72 = vector.shape_cast %69 : vector<8x256xf32> to vector<1x8x256xf32>
    tpu.vector_store %arg10[%c0_33, %c0_34, %c0_35], %72 {strides = array<i32>} : memref<1x8x256xf32, #tpu.memory_space<vmem>>, vector<1x8x256xf32>,
    return
  }
  func.func @transform_0(%arg0: i32, %arg1: i32) -> (i32, i32, i32) {
    %c0_i32 = arith.constant 0 : i32
    %c0_i32_0 = arith.constant 0 : i32
    return %arg0, %c0_i32, %arg1 : i32, i32, i32
  }
  func.func @transform_1(%arg0: i32, %arg1: i32) -> (i32, i32) {
    %c0_i32 = arith.constant 0 : i32
    %c0_i32_0 = arith.constant 0 : i32
    %c0_i32_1 = arith.constant 0 : i32
    return %c0_i32, %c0_i32_0 : i32, i32
  }
  func.func @transform_2(%arg0: i32, %arg1: i32) -> (i32, i32) {
    %c0_i32 = arith.constant 0 : i32
    %c0_i32_0 = arith.constant 0 : i32
    %c0_i32_1 = arith.constant 0 : i32
    return %c0_i32, %c0_i32_0 : i32, i32
  }
  func.func @transform_3(%arg0: i32, %arg1: i32) -> (i32, i32) {
    %c0_i32 = arith.constant 0 : i32
    %c0_i32_0 = arith.constant 0 : i32
    %c0_i32_1 = arith.constant 0 : i32
    return %c0_i32, %c0_i32_0 : i32, i32
  }
  func.func @transform_4(%arg0: i32, %arg1: i32) -> (i32, i32) {
    %c0_i32 = arith.constant 0 : i32
    %c0_i32_0 = arith.constant 0 : i32
    %c0_i32_1 = arith.constant 0 : i32
    return %c0_i32, %c0_i32_0 : i32, i32
  }
  func.func @transform_5(%arg0: i32, %arg1: i32) -> (i32, i32) {
    %c0_i32 = arith.constant 0 : i32
    %c0_i32_0 = arith.constant 0 : i32
    %c0_i32_1 = arith.constant 0 : i32
    return %c0_i32, %c0_i32_0 : i32, i32
  }
  func.func @transform_6(%arg0: i32, %arg1: i32) -> (i32, i32) {
    %c0_i32 = arith.constant 0 : i32
    %c0_i32_0 = arith.constant 0 : i32
    %c0_i32_1 = arith.constant 0 : i32
    return %c0_i32, %c0_i32_0 : i32, i32
  }
  func.func @transform_7(%arg0: i32, %arg1: i32) -> (i32, i32) {
    %c0_i32 = arith.constant 0 : i32
    %c0_i32_0 = arith.constant 0 : i32
    %c0_i32_1 = arith.constant 0 : i32
    return %c0_i32, %c0_i32_0 : i32, i32
  }
  func.func @transform_8(%arg0: i32, %arg1: i32) -> (i32, i32, i32) {
    %c0_i32 = arith.constant 0 : i32
    %c0_i32_0 = arith.constant 0 : i32
    return %arg0, %c0_i32, %arg1 : i32, i32, i32
  }
}

</mosaic_0001>

<llo_original>
// kernel: tpu_custom_call.1
$region0: #{tpu_custom_call.1}
  #allocation0 [shape = 'u32[]', space=smem, size = 0x4, offset = 0x4, fixed_abs, tag = 'smem constant byte address 0x4 - core index']
  #allocation1 [shape = 'u32[144,128]{1,0:T(1,128)}', space=vmem, size = 0x12000, scoped, tag = 'internal scratch']
  %s0 = inlined_call_operand.vmem [shape: f32[2,8,256], index: 0, kind: input, shape index: {}]
  %s1 = inlined_call_operand.vmem [shape: f32[32,1], index: 1, kind: input, shape index: {}]
  %s2 = inlined_call_operand.vmem [shape: f32[32,1], index: 2, kind: input, shape index: {}]
  %s3 = inlined_call_operand.vmem [shape: f32[32,1], index: 3, kind: input, shape index: {}]
  %s4 = inlined_call_operand.vmem [shape: bf16[64,32], index: 4, kind: input, shape index: {}]
  %s5 = inlined_call_operand.vmem [shape: f32[64,1], index: 5, kind: input, shape index: {}]
  %s6 = inlined_call_operand.vmem [shape: bf16[8,64], index: 6, kind: input, shape index: {}]
  %s7 = inlined_call_operand.vmem [shape: f32[8,1], index: 7, kind: input, shape index: {}]
  %s8 = inlined_call_operand.hbm [shape: f32[2,8,256], index: 8, kind: output, shape index: {}]
  %s9 = sld [smem:[#allocation0]]
  $region65: #{tpu_custom_call.1} parent=0
    _
  %s11 = ssub.s32 1, %s9
  %s12 = scalar_select 0, %s11, %s9
  $region1: #{tpu_custom_call.1} parent=0
    #allocation2 [shape = 'u8[16384]{0}', space=vmem, size = 0x4000, scoped, tag = 'output window, operand 0']
    #allocation3 [shape = 's32[2]{0}', space=sflag, size = 0x8, scoped, tag = 'scoped memory for tpu_custom_call.1']
    %13 = vsyncpa [#allocation3], 0
    %s14 = scalar_lea.sflag [#allocation3], 1
    %15 = vsyncpa %s14, 0
    loop: start=0, step=1, limit=4
    $region2: #{tpu_custom_call.1} parent=1 // loop_pre_header
      _
    $region3: #{tpu_custom_call.1} parent=1 // loop_header
      %s17 = sphi 0, %s21
      %p18 = scmp.ge.s32.totalorder %s17, 4
      %s24 = sphi 0, %s36
      %s25 = sphi 0, %s32
      %s26 = sphi 0, %s24
      %s27 = sphi 0, %s25
      %s28 = sphi 0, %s26
      %s29 = sphi 0, %s27
      %s41 = sphi 0, %s43
      %s44 = sphi 0, %s41
      %s45 = sphi 0, %s44
      %s61 = sphi 0, %s45
      %s65 = sphi 0, %s65
      %s67 = sphi 0, %s65
      %s68 = sphi 0, %s67
      %s82 = sphi 0, %s68
      %s86 = sphi 0, %s86
      %s88 = sphi 0, %s86
      %s89 = sphi 0, %s88
      %s103 = sphi 0, %s89
      %s107 = sphi 0, %s107
      %s109 = sphi 0, %s107
      %s110 = sphi 0, %s109
      %s124 = sphi 0, %s110
      %s128 = sphi 0, %s128
      %s130 = sphi 0, %s128
      %s131 = sphi 0, %s130
      %s145 = sphi 0, %s131
      %s149 = sphi 0, %s149
      %s151 = sphi 0, %s149
      %s152 = sphi 0, %s151
      %s166 = sphi 0, %s152
      %s170 = sphi 0, %s170
      %s172 = sphi 0, %s170
      %s173 = sphi 0, %s172
      %s187 = sphi 0, %s173
      %s191 = sphi 0, %s191
      %s193 = sphi 0, %s191
      %s194 = sphi 0, %s193
      %s208 = sphi 0, %s194
      %s216 = sphi 0, %s218
      %s219 = sphi 0, %s216
      %s220 = sphi 0, %s219
      %s236 = sphi 0, %s220
    $region4: #{tpu_custom_call.1} parent=1 // loop_header_branch
      %20 = sbr.rel (%p18) target = $region8
    $region5: #{tpu_custom_call.1} parent=1 // loop_body
      %s22 = ssub.s32 %s17, 1
      %s23 = ssub.s32 %s17, 2
      %s30 = sadd.s32 1, %s25
      %p31 = scmp.ge.s32.totalorder %s30, 1
      %s32 = scalar_select %p31, 0, %s30
      %s33 = sadd.s32 1, %s24
      %s34 = scalar_select %p31, %s33, %s24
      %p35 = scmp.ge.s32.totalorder %s34, 2
      %s36 = scalar_select %p35, 0, %s34
      %s37 = ssub.s32 %s24, %s36
      %s38 = ssub.s32 %s25, %s32
      %s39 = sor.u32 %s37, %s38
      %p40 = scmp.eq.s32.totalorder %s39, 0
      %s42 = sadd.s32 %s41, 1
      %s43 = scalar_select %p40, %s41, %s42
      %p46 = pneg %p40
      %p47 = scmp.eq.s32.totalorder %s17, 1
      %p48 = por %p46, %p47
      %p49 = scmp.ne.s32.totalorder %s41, %s44
      %p50 = scmp.eq.s32.totalorder %s17, 0
      %p51 = por %p49, %p50
      %p52 = scmp.ne.s32.totalorder %s41, %s44
      %p53 = scmp.eq.s32.totalorder %s22, 1
      %p54 = por %p52, %p53
      %p55 = scmp.ne.s32.totalorder %s44, %s45
      %p56 = scmp.eq.s32.totalorder %s22, 0
      %p57 = por %p55, %p56
      %p58 = scmp.ne.s32.totalorder %s44, %s45
      %p59 = scmp.eq.s32.totalorder %s23, 1
      %p60 = por %p58, %p59
      %p62 = scmp.ne.s32.totalorder %s45, %s61
      %p63 = scmp.eq.s32.totalorder %s23, 0
      %p64 = por %p62, %p63
      %s66 = sadd.s32 %s65, 1
      %p69 = scmp.eq.s32.totalorder %s17, 1
      %p70 = scmp.ne.s32.totalorder %s65, %s67
      %p71 = scmp.eq.s32.totalorder %s17, 0
      %p72 = por %p70, %p71
      %p73 = scmp.ne.s32.totalorder %s65, %s67
      %p74 = scmp.eq.s32.totalorder %s22, 1
      %p75 = por %p73, %p74
      %p76 = scmp.ne.s32.totalorder %s67, %s68
      %p77 = scmp.eq.s32.totalorder %s22, 0
      %p78 = por %p76, %p77
      %p79 = scmp.ne.s32.totalorder %s67, %s68
      %p80 = scmp.eq.s32.totalorder %s23, 1
      %p81 = por %p79, %p80
      %p83 = scmp.ne.s32.totalorder %s68, %s82
      %p84 = scmp.eq.s32.totalorder %s23, 0
      %p85 = por %p83, %p84
      %s87 = sadd.s32 %s86, 1
      %p90 = scmp.eq.s32.totalorder %s17, 1
      %p91 = scmp.ne.s32.totalorder %s86, %s88
      %p92 = scmp.eq.s32.totalorder %s17, 0
      %p93 = por %p91, %p92
      %p94 = scmp.ne.s32.totalorder %s86, %s88
      %p95 = scmp.eq.s32.totalorder %s22, 1
      %p96 = por %p94, %p95
      %p97 = scmp.ne.s32.totalorder %s88, %s89
      %p98 = scmp.eq.s32.totalorder %s22, 0
      %p99 = por %p97, %p98
      %p100 = scmp.ne.s32.totalorder %s88, %s89
      %p101 = scmp.eq.s32.totalorder %s23, 1
      %p102 = por %p100, %p101
      %p104 = scmp.ne.s32.totalorder %s89, %s103
      %p105 = scmp.eq.s32.totalorder %s23, 0
      %p106 = por %p104, %p105
      %s108 = sadd.s32 %s107, 1
      %p111 = scmp.eq.s32.totalorder %s17, 1
      %p112 = scmp.ne.s32.totalorder %s107, %s109
      %p113 = scmp.eq.s32.totalorder %s17, 0
      %p114 = por %p112, %p113
      %p115 = scmp.ne.s32.totalorder %s107, %s109
      %p116 = scmp.eq.s32.totalorder %s22, 1
      %p117 = por %p115, %p116
      %p118 = scmp.ne.s32.totalorder %s109, %s110
      %p119 = scmp.eq.s32.totalorder %s22, 0
      %p120 = por %p118, %p119
      %p121 = scmp.ne.s32.totalorder %s109, %s110
      %p122 = scmp.eq.s32.totalorder %s23, 1
      %p123 = por %p121, %p122
      %p125 = scmp.ne.s32.totalorder %s110, %s124
      %p126 = scmp.eq.s32.totalorder %s23, 0
      %p127 = por %p125, %p126
      %s129 = sadd.s32 %s128, 1
      %p132 = scmp.eq.s32.totalorder %s17, 1
      %p133 = scmp.ne.s32.totalorder %s128, %s130
      %p134 = scmp.eq.s32.totalorder %s17, 0
      %p135 = por %p133, %p134
      %p136 = scmp.ne.s32.totalorder %s128, %s130
      %p137 = scmp.eq.s32.totalorder %s22, 1
      %p138 = por %p136, %p137
      %p139 = scmp.ne.s32.totalorder %s130, %s131
      %p140 = scmp.eq.s32.totalorder %s22, 0
      %p141 = por %p139, %p140
      %p142 = scmp.ne.s32.totalorder %s130, %s131
      %p143 = scmp.eq.s32.totalorder %s23, 1
      %p144 = por %p142, %p143
      %p146 = scmp.ne.s32.totalorder %s131, %s145
      %p147 = scmp.eq.s32.totalorder %s23, 0
      %p148 = por %p146, %p147
      %s150 = sadd.s32 %s149, 1
      %p153 = scmp.eq.s32.totalorder %s17, 1
      %p154 = scmp.ne.s32.totalorder %s149, %s151
      %p155 = scmp.eq.s32.totalorder %s17, 0
      %p156 = por %p154, %p155
      %p157 = scmp.ne.s32.totalorder %s149, %s151
      %p158 = scmp.eq.s32.totalorder %s22, 1
      %p159 = por %p157, %p158
      %p160 = scmp.ne.s32.totalorder %s151, %s152
      %p161 = scmp.eq.s32.totalorder %s22, 0
      %p162 = por %p160, %p161
      %p163 = scmp.ne.s32.totalorder %s151, %s152
      %p164 = scmp.eq.s32.totalorder %s23, 1
      %p165 = por %p163, %p164
      %p167 = scmp.ne.s32.totalorder %s152, %s166
      %p168 = scmp.eq.s32.totalorder %s23, 0
      %p169 = por %p167, %p168
      %s171 = sadd.s32 %s170, 1
      %p174 = scmp.eq.s32.totalorder %s17, 1
      %p175 = scmp.ne.s32.totalorder %s170, %s172
      %p176 = scmp.eq.s32.totalorder %s17, 0
      %p177 = por %p175, %p176
      %p178 = scmp.ne.s32.totalorder %s170, %s172
      %p179 = scmp.eq.s32.totalorder %s22, 1
      %p180 = por %p178, %p179
      %p181 = scmp.ne.s32.totalorder %s172, %s173
      %p182 = scmp.eq.s32.totalorder %s22, 0
      %p183 = por %p181, %p182
      %p184 = scmp.ne.s32.totalorder %s172, %s173
      %p185 = scmp.eq.s32.totalorder %s23, 1
      %p186 = por %p184, %p185
      %p188 = scmp.ne.s32.totalorder %s173, %s187
      %p189 = scmp.eq.s32.totalorder %s23, 0
      %p190 = por %p188, %p189
      %s192 = sadd.s32 %s191, 1
      %p195 = scmp.eq.s32.totalorder %s17, 1
      %p196 = scmp.ne.s32.totalorder %s191, %s193
      %p197 = scmp.eq.s32.totalorder %s17, 0
      %p198 = por %p196, %p197
      %p199 = scmp.ne.s32.totalorder %s191, %s193
      %p200 = scmp.eq.s32.totalorder %s22, 1
      %p201 = por %p199, %p200
      %p202 = scmp.ne.s32.totalorder %s193, %s194
      %p203 = scmp.eq.s32.totalorder %s22, 0
      %p204 = por %p202, %p203
      %p205 = scmp.ne.s32.totalorder %s193, %s194
      %p206 = scmp.eq.s32.totalorder %s23, 1
      %p207 = por %p205, %p206
      %p209 = scmp.ne.s32.totalorder %s194, %s208
      %p210 = scmp.eq.s32.totalorder %s23, 0
      %p211 = por %p209, %p210
      %s212 = ssub.s32 %s24, %s36
      %s213 = ssub.s32 %s25, %s32
      %s214 = sor.u32 %s212, %s213
      %p215 = scmp.eq.s32.totalorder %s214, 0
      %s217 = sadd.s32 %s216, 1
      %s218 = scalar_select %p215, %s216, %s217
      %p221 = pneg %p215
      %p222 = scmp.eq.s32.totalorder %s17, 1
      %p223 = por %p221, %p222
      %p224 = scmp.ne.s32.totalorder %s216, %s219
      %p225 = scmp.eq.s32.totalorder %s17, 0
      %p226 = por %p224, %p225
      %p227 = scmp.ne.s32.totalorder %s216, %s219
      %p228 = scmp.eq.s32.totalorder %s22, 1
      %p229 = por %p227, %p228
      %p230 = scmp.ne.s32.totalorder %s219, %s220
      %p231 = scmp.eq.s32.totalorder %s22, 0
      %p232 = por %p230, %p231
      %p233 = scmp.ne.s32.totalorder %s219, %s220
      %p234 = scmp.eq.s32.totalorder %s23, 1
      %p235 = por %p233, %p234
      %p237 = scmp.ne.s32.totalorder %s220, %s236
      %p238 = scmp.eq.s32.totalorder %s23, 0
      %p239 = por %p237, %p238
      %p240 = scmp.le.s32.totalorder 1, %s17
      %p241 = scmp.lt.s32.totalorder %s17, 3
      %p242 = pnand %p240, %p241
      %p243 = pneg %p242
      // Predicated region
      $region9: #{tpu_custom_call.1} parent=5 // pred_check
        _
      $region10: #{tpu_custom_call.1} parent=5 // pred_check_branch
        %245 = sbr.rel (%p242) target = $region12
      $region11: #{tpu_custom_call.1} parent=5 // pred_region
        %s246 = ssub.s32 %s17, 1
        // Predicated region
        $region13: #{tpu_custom_call.1} parent=11 // pred_check
          %p247 = pneg %p78
        $region14: #{tpu_custom_call.1} parent=11 // pred_check_branch
          %249 = sbr.rel (%p247) target = $region16
        $region15: #{tpu_custom_call.1} parent=11 // pred_region
          _
        $region16: #{tpu_custom_call.1} parent=11 // pred_fallthru
          _
        // Predicated region
        $region17: #{tpu_custom_call.1} parent=11 // pred_check
          %p250 = pneg %p99
        $region18: #{tpu_custom_call.1} parent=11 // pred_check_branch
          %252 = sbr.rel (%p250) target = $region20
        $region19: #{tpu_custom_call.1} parent=11 // pred_region
          _
        $region20: #{tpu_custom_call.1} parent=11 // pred_fallthru
          _
        // Predicated region
        $region21: #{tpu_custom_call.1} parent=11 // pred_check
          %p253 = pneg %p120
        $region22: #{tpu_custom_call.1} parent=11 // pred_check_branch
          %255 = sbr.rel (%p253) target = $region24
        $region23: #{tpu_custom_call.1} parent=11 // pred_region
          _
        $region24: #{tpu_custom_call.1} parent=11 // pred_fallthru
          _
        // Predicated region
        $region25: #{tpu_custom_call.1} parent=11 // pred_check
          %p256 = pneg %p141
        $region26: #{tpu_custom_call.1} parent=11 // pred_check_branch
          %258 = sbr.rel (%p256) target = $region28
        $region27: #{tpu_custom_call.1} parent=11 // pred_region
          _
        $region28: #{tpu_custom_call.1} parent=11 // pred_fallthru
          _
        // Predicated region
        $region29: #{tpu_custom_call.1} parent=11 // pred_check
          %p259 = pneg %p162
        $region30: #{tpu_custom_call.1} parent=11 // pred_check_branch
          %261 = sbr.rel (%p259) target = $region32
        $region31: #{tpu_custom_call.1} parent=11 // pred_region
          _
        $region32: #{tpu_custom_call.1} parent=11 // pred_fallthru
          _
        // Predicated region
        $region33: #{tpu_custom_call.1} parent=11 // pred_check
          %p262 = pneg %p183
        $region34: #{tpu_custom_call.1} parent=11 // pred_check_branch
          %264 = sbr.rel (%p262) target = $region36
        $region35: #{tpu_custom_call.1} parent=11 // pred_region
          _
        $region36: #{tpu_custom_call.1} parent=11 // pred_fallthru
          _
        // Predicated region
        $region37: #{tpu_custom_call.1} parent=11 // pred_check
          %p265 = pneg %p204
        $region38: #{tpu_custom_call.1} parent=11 // pred_check_branch
          %267 = sbr.rel (%p265) target = $region40
        $region39: #{tpu_custom_call.1} parent=11 // pred_region
          _
        $region40: #{tpu_custom_call.1} parent=11 // pred_fallthru
          _
      $region12: #{tpu_custom_call.1} parent=5 // pred_fallthru
        _
      %p268 = scmp.lt.s32.totalorder %s17, 2
      // Predicated region
      $region41: #{tpu_custom_call.1} parent=5 // pred_check
        %p269 = pneg %p268
      $region42: #{tpu_custom_call.1} parent=5 // pred_check_branch
        %271 = sbr.rel (%p269) target = $region44
      $region43: #{tpu_custom_call.1} parent=5 // pred_region
        // Predicated region
        $region45: #{tpu_custom_call.1} parent=43 // pred_check
          %p272 = pneg %p51
        $region46: #{tpu_custom_call.1} parent=43 // pred_check_branch
          %274 = sbr.rel (%p272) target = $region48
        $region47: #{tpu_custom_call.1} parent=43 // pred_region
          %s275 = smul.u32 2, %s25
          %p276 = scmp.lt.s32.totalorder %s24, 1
          %s277 = scalar_select %p276, %s24, 1
          %p278 = scmp.lt.s32.totalorder %s275, 1
          %s279 = scalar_select %p278, %s275, 1
          %s280 = smul.addr %s277, 2
          %s281 = sadd.s32 %s279, %s280
          %s282 = smul.addr %s281, 8
          %s283 = scalar_lea.vmem %s0, %s282
          %s284 = smul.u32 2, %s25
        $region48: #{tpu_custom_call.1} parent=43 // pred_fallthru
          _
      $region44: #{tpu_custom_call.1} parent=5 // pred_fallthru
        _
      %p285 = scmp.le.s32.totalorder 1, %s17
      %p286 = scmp.lt.s32.totalorder %s17, 3
      %p287 = pnand %p285, %p286
      %p288 = pneg %p287
      // Predicated region
      $region49: #{tpu_custom_call.1} parent=5 // pred_check
        _
      $region50: #{tpu_custom_call.1} parent=5 // pred_check_branch
        %290 = sbr.rel (%p287) target = $region52
      $region51: #{tpu_custom_call.1} parent=5 // pred_region
        %s291 = ssub.s32 %s17, 1
        %s292 = smul.u32 2, %s27
        %p293 = scmp.lt.s32.totalorder %s26, 1
        %s294 = scalar_select %p293, %s26, 1
        %p295 = scmp.lt.s32.totalorder %s292, 1
        %s296 = scalar_select %p295, %s292, 1
        %s297 = smul.addr %s294, 2
        %s298 = sadd.s32 %s296, %s297
        %s299 = smul.addr %s298, 8
        %s300 = scalar_lea.vmem %s0, %s299
        %p301 = pneg %p57
        %p302 = pneg %p54
        %p303 = pneg %p78
        %p304 = pneg %p75
        %p305 = pneg %p99
        %p306 = pneg %p96
        %p307 = pneg %p120
        %p308 = pneg %p117
        %p309 = pneg %p141
        %p310 = pneg %p138
        %p311 = pneg %p162
        %p312 = pneg %p159
        %p313 = pneg %p183
        %p314 = pneg %p180
        %p315 = pneg %p204
        %p316 = pneg %p201
        %p317 = pneg %p232
        %p318 = pneg %p229
        %s319 = sand.u32 %s219, 1
        %s320 = scalar_lea.sflag [#allocation3], %s319
        %s321 = sand.u32 %s219, 1
        %s322 = smul.addr %s321, 16
        %s323 = scalar_lea.vmem [#allocation2], %s322
        %s324 = smul.u32 2, %s27
        %p325 = scmp.lt.s32.totalorder %s26, 1
        %s326 = scalar_select %p325, %s26, 1
        %p327 = scmp.lt.s32.totalorder %s324, 1
        %s328 = scalar_select %p327, %s324, 1
        %s329 = smul.addr %s326, 2
        %s330 = sadd.s32 %s328, %s329
        %s331 = smul.addr %s330, 8
        %s332 = scalar_lea.vmem %s0, %s331
        %s333 = smul.u32 2, %s27
        %s334 = smul.u32 2, %s27
        %s336 = smul.u32 %s27, 256
        %s337 = scvt.s32.f32 %s336
        %v338 = vld [vmem:[%s1] sm:$0xff]
        %v339 = vld [vmem:[%s1 + $0x8] sm:$0xff]
        %v340 = vld [vmem:[%s1 + $0x10] sm:$0xff]
        %v341 = vld [vmem:[%s1 + $0x18] sm:$0xff]
        %v342 = vld [vmem:[%s2] sm:$0xff]
        %v343 = vld [vmem:[%s2 + $0x8] sm:$0xff]
        %v344 = vld [vmem:[%s2 + $0x10] sm:$0xff]
        %v345 = vld [vmem:[%s2 + $0x18] sm:$0xff]
        %v346 = vld [vmem:[%s4] sm:$0xf]
        %v347 = vld [vmem:[%s4 + $0x4] sm:$0xf]
        %v348 = vld [vmem:[%s4 + $0x8] sm:$0xf]
        %v349 = vld [vmem:[%s4 + $0xc] sm:$0xf]
        %v350 = vld [vmem:[%s4 + $0x10] sm:$0xf]
        %v351 = vld [vmem:[%s4 + $0x14] sm:$0xf]
        %v352 = vld [vmem:[%s4 + $0x18] sm:$0xf]
        %v353 = vld [vmem:[%s4 + $0x1c] sm:$0xf]
        %v354 = vld [vmem:[%s6] sm:$0xf]
        %v355 = vld [vmem:[%s3] sm:$0xff]
        %v356 = vld [vmem:[%s3 + $0x8] sm:$0xff]
        %v357 = vld [vmem:[%s3 + $0x10] sm:$0xff]
        %v358 = vld [vmem:[%s3 + $0x18] sm:$0xff]
        %360 = vset.pattern.permute.xlu0 0
        %361 = vperm.xlu0 %360, %v355
        %v362 = vpop.permute.xlu0 %361
        %365 = vset.pattern.permute.xlu0 0
        %366 = vperm.xlu0 %365, %v356
        %v367 = vpop.permute.xlu0 %366
        %370 = vset.pattern.permute.xlu0 0
        %371 = vperm.xlu0 %370, %v357
        %v372 = vpop.permute.xlu0 %371
        %375 = vset.pattern.permute.xlu0 0
        %376 = vperm.xlu0 %375, %v358
        %v377 = vpop.permute.xlu0 %376
        %v379 = vld [vmem:[%s5] sm:$0xff]
        %v380 = vld [vmem:[%s5 + $0x8] sm:$0xff]
        %v381 = vld [vmem:[%s5 + $0x10] sm:$0xff]
        %v382 = vld [vmem:[%s5 + $0x18] sm:$0xff]
        %v383 = vld [vmem:[%s5 + $0x20] sm:$0xff]
        %v384 = vld [vmem:[%s5 + $0x28] sm:$0xff]
        %v385 = vld [vmem:[%s5 + $0x30] sm:$0xff]
        %v386 = vld [vmem:[%s5 + $0x38] sm:$0xff]
        %388 = vset.pattern.permute.xlu0 0
        %389 = vperm.xlu0 %388, %v379
        %v390 = vpop.permute.xlu0 %389
        %393 = vset.pattern.permute.xlu0 0
        %394 = vperm.xlu0 %393, %v380
        %v395 = vpop.permute.xlu0 %394
        %398 = vset.pattern.permute.xlu0 0
        %399 = vperm.xlu0 %398, %v381
        %v400 = vpop.permute.xlu0 %399
        %403 = vset.pattern.permute.xlu0 0
        %404 = vperm.xlu0 %403, %v382
        %v405 = vpop.permute.xlu0 %404
        %408 = vset.pattern.permute.xlu0 0
        %409 = vperm.xlu0 %408, %v383
        %v410 = vpop.permute.xlu0 %409
        %413 = vset.pattern.permute.xlu0 0
        %414 = vperm.xlu0 %413, %v384
        %v415 = vpop.permute.xlu0 %414
        %418 = vset.pattern.permute.xlu0 0
        %419 = vperm.xlu0 %418, %v385
        %v420 = vpop.permute.xlu0 %419
        %423 = vset.pattern.permute.xlu0 0
        %424 = vperm.xlu0 %423, %v386
        %v425 = vpop.permute.xlu0 %424
        %v427 = vld [vmem:[%s7] sm:$0xff]
        %429 = vset.pattern.permute.xlu0 0
        %430 = vperm.xlu0 %429, %v427
        %v431 = vpop.permute.xlu0 %430
        %s433 = sadd.f32 %s337, 0.0
        %v434 = vlaneseq
        %v435 = vand.u32 %v434, 127
        %v436 = vadd.s32 %v435, 128
        %v437 = vcvt.s32.f32 %v435
        %v438 = vcvt.s32.f32 %v436
        %v439 = vstv %s433
        %v440 = vadd.f32 %v439, %v437
        %v441 = vadd.f32 %v439, %v438
        %v442 = vmul.f32 %v440, 0.0625
        %v443 = vmul.f32 %v441, 0.0625
        %v444 = vfloor.f32 %v442
        %v445 = vfloor.f32 %v443
        %v446 = vmul.f32 %v444, 16.0
        %v447 = vmul.f32 %v445, 16.0
        %v448 = vsub.f32 %v440, %v446
        %v449 = vsub.f32 %v441, %v447
        %vm450 = vcmp.ge.f32.partialorder %v448, 16.0
        %vm451 = vcmp.ge.f32.partialorder %v449, 16.0
        %v452 = vsel %vm450, 1.0, 0.0
        %v453 = vsel %vm451, 1.0, 0.0
        %v454 = vadd.f32 %v444, %v452
        %v455 = vadd.f32 %v445, %v453
        %vm456 = vcmp.lt.f32.partialorder %v448, 0.0
        %vm457 = vcmp.lt.f32.partialorder %v449, 0.0
        %v458 = vsel %vm456, 1.0, 0.0
        %v459 = vsel %vm457, 1.0, 0.0
        %v460 = vsub.f32 %v454, %v458
        %v461 = vsub.f32 %v455, %v459
        %v462 = vmul.f32 %v460, 16.0
        %v463 = vmul.f32 %v461, 16.0
        %v464 = vsub.f32 %v440, %v462
        %v465 = vsub.f32 %v441, %v463
        %v466 = vsub.f32 %v464, 8.0
        %v467 = vsub.f32 %v465, 8.0
        %v468 = vmul.f32 %v466, 0.08928572
        %v469 = vmul.f32 %v467, 0.08928572
        %v470 = vsub.f32 %v460, 8.0
        %v471 = vsub.f32 %v461, 8.0
        %v472 = vmul.f32 %v470, 0.08928572
        %v473 = vmul.f32 %v471, 0.08928572
        %475 = vset.pattern.permute.xlu0 0
        %476 = vperm.xlu0 %475, %v338
        %v477 = vpop.permute.xlu0 %476
        %480 = vset.pattern.permute.xlu0 0
        %481 = vperm.xlu0 %480, %v339
        %v482 = vpop.permute.xlu0 %481
        %485 = vset.pattern.permute.xlu0 0
        %486 = vperm.xlu0 %485, %v340
        %v487 = vpop.permute.xlu0 %486
        %490 = vset.pattern.permute.xlu0 0
        %491 = vperm.xlu0 %490, %v341
        %v492 = vpop.permute.xlu0 %491
        %v494 = vmul.f32 %v477, %v468
        %v495 = vmul.f32 %v477, %v469
        %v496 = vmul.f32 %v482, %v468
        %v497 = vmul.f32 %v482, %v469
        %v498 = vmul.f32 %v487, %v468
        %v499 = vmul.f32 %v487, %v469
        %v500 = vmul.f32 %v492, %v468
        %v501 = vmul.f32 %v492, %v469
        %503 = vset.pattern.permute.xlu0 0
        %504 = vperm.xlu0 %503, %v342
        %v505 = vpop.permute.xlu0 %504
        %508 = vset.pattern.permute.xlu0 0
        %509 = vperm.xlu0 %508, %v343
        %v510 = vpop.permute.xlu0 %509
        %513 = vset.pattern.permute.xlu0 0
        %514 = vperm.xlu0 %513, %v344
        %v515 = vpop.permute.xlu0 %514
        %518 = vset.pattern.permute.xlu0 0
        %519 = vperm.xlu0 %518, %v345
        %v520 = vpop.permute.xlu0 %519
        %v522 = vmul.f32 %v505, %v472
        %v523 = vmul.f32 %v505, %v473
        %v524 = vmul.f32 %v510, %v472
        %v525 = vmul.f32 %v510, %v473
        %v526 = vmul.f32 %v515, %v472
        %v527 = vmul.f32 %v515, %v473
        %v528 = vmul.f32 %v520, %v472
        %v529 = vmul.f32 %v520, %v473
        %v530 = vadd.f32 %v494, %v522
        %v531 = vadd.f32 %v495, %v523
        %v532 = vadd.f32 %v496, %v524
        %v533 = vadd.f32 %v497, %v525
        %v534 = vadd.f32 %v498, %v526
        %v535 = vadd.f32 %v499, %v527
        %v536 = vadd.f32 %v500, %v528
        %v537 = vadd.f32 %v501, %v529
        %v538 = vadd.f32 %v530, %v362
        %v539 = vadd.f32 %v531, %v362
        %v540 = vadd.f32 %v532, %v367
        %v541 = vadd.f32 %v533, %v367
        %v542 = vadd.f32 %v534, %v372
        %v543 = vadd.f32 %v535, %v372
        %v544 = vadd.f32 %v536, %v377
        %v545 = vadd.f32 %v537, %v377
        %v546 = vmax.f32 %v538, 0.0
        %v547 = vmax.f32 %v539, 0.0
        %v548 = vmax.f32 %v540, 0.0
        %v549 = vmax.f32 %v541, 0.0
        %v550 = vmax.f32 %v542, 0.0
        %v551 = vmax.f32 %v543, 0.0
        %v552 = vmax.f32 %v544, 0.0
        %v553 = vmax.f32 %v545, 0.0
        %v554 = vpack.c.bf16 %v548, %v546
        %v555 = vpack.c.bf16 %v549, %v547
        %v556 = vpack.c.bf16 %v552, %v550
        %v557 = vpack.c.bf16 %v553, %v551
        %v566 = vunpack.c.l.b16 %v346
        %v567 = vunpack.c.l.b16 %v347
        %v568 = vunpack.c.l.b16 %v348
        %v569 = vunpack.c.l.b16 %v349
        %v570 = vunpack.c.l.b16 %v350
        %v571 = vunpack.c.l.b16 %v351
        %v572 = vunpack.c.l.b16 %v352
        %v573 = vunpack.c.l.b16 %v353
        %v574 = vpack.c.b16 %v567, %v566
        %v575 = vpack.c.b16 %v569, %v568
        %v576 = vpack.c.b16 %v571, %v570
        %v577 = vpack.c.b16 %v573, %v572
        %vm578 = vcmask 261120
        %v580 = vsel %vm578, %v574, 0
        %v583 = vsel %vm578, %v575, 0
        %v586 = vsel %vm578, %v576, 0
        %v589 = vsel %vm578, %v577, 0
        %591 = vmatprep.subr.bf16.mxu0 %v555
        %592 = vmatpush1.bf16.msra.mxu0 %v554
        %593 = vmatprep.subr.bf16.mxu0 %v557
        %594 = vmatpush1.bf16.msra.mxu0 %v556
        %595 = vmatprep.subr.bf16.mxu0 0
        %596 = vmatpush1.bf16.msra.mxu0 0
        %597 = vmatprep.subr.bf16.mxu0 0
        %598 = vmatpush1.bf16.msra.mxu0 0
        %599 = vmatprep.subr.bf16.mxu0 0
        %600 = vmatpush1.bf16.msra.mxu0 0
        %601 = vmatprep.subr.bf16.mxu0 0
        %602 = vmatpush1.bf16.msra.mxu0 0
        %603 = vmatprep.subr.bf16.mxu0 0
        %604 = vmatpush1.bf16.msra.mxu0 0
        %605 = vmatprep.subr.bf16.mxu0 0
        %606 = vmatpush1.bf16.msra.mxu0 0
        %607 = vmatprep.subr.bf16.mxu0 0
        %608 = vmatpush1.bf16.msra.mxu0 0
        %609 = vmatprep.subr.bf16.mxu0 0
        %610 = vmatpush1.bf16.msra.mxu0 0
        %611 = vmatprep.subr.bf16.mxu0 0
        %612 = vmatpush1.bf16.msra.mxu0 0
        %613 = vmatprep.subr.bf16.mxu0 0
        %614 = vmatpush1.bf16.msra.mxu0 0
        %615 = vmatprep.subr.bf16.mxu0 0
        %616 = vmatpush1.bf16.msra.mxu0 0
        %617 = vmatprep.subr.bf16.mxu0 0
        %618 = vmatpush1.bf16.msra.mxu0 0
        %619 = vmatprep.subr.bf16.mxu0 0
        %620 = vmatpush1.bf16.msra.mxu0 0
        %621 = vmatprep.subr.bf16.mxu0 0
        %622 = vmatpush1.bf16.msra.mxu0 0
        %623 = vmatprep.mubr.bf16.mxu0 0
        %624 = vmatmul.mubr.bf16.gmra.mrb[0].mxu0 %v580
        %v625 = vpop.f32.mrb[0].mxu0
        %v626 = vadd.f32 %v390, %v625
        %v627 = vpop.f32.mrb[0].mxu0
        %v628 = vadd.f32 %v390, %v627
        %v629 = vpop.f32.mrb[0].mxu0
        %v630 = vadd.f32 %v395, %v629
        %v631 = vpop.f32.mrb[0].mxu0
        %v632 = vadd.f32 %v395, %v631
        %633 = vmatprep.mubr.bf16.mxu0 0
        %634 = vmatmul.mubr.bf16.gmra.mrb[0].mxu0 %v583
        %v635 = vpop.f32.mrb[0].mxu0
        %v636 = vadd.f32 %v400, %v635
        %v637 = vpop.f32.mrb[0].mxu0
        %v638 = vadd.f32 %v400, %v637
        %v639 = vpop.f32.mrb[0].mxu0
        %v640 = vadd.f32 %v405, %v639
        %v641 = vpop.f32.mrb[0].mxu0
        %v642 = vadd.f32 %v405, %v641
        %643 = vmatprep.mubr.bf16.mxu0 0
        %644 = vmatmul.mubr.bf16.gmra.mrb[0].mxu0 %v586
        %v645 = vpop.f32.mrb[0].mxu0
        %v646 = vadd.f32 %v410, %v645
        %v647 = vpop.f32.mrb[0].mxu0
        %v648 = vadd.f32 %v410, %v647
        %v649 = vpop.f32.mrb[0].mxu0
        %v650 = vadd.f32 %v415, %v649
        %v651 = vpop.f32.mrb[0].mxu0
        %v652 = vadd.f32 %v415, %v651
        %653 = vmatprep.mubr.bf16.mxu0 0
        %654 = vmatmul.mubr.bf16.gmra.mrb[0].mxu0 %v589
        %v655 = vpop.f32.mrb[0].mxu0
        %v656 = vadd.f32 %v420, %v655
        %v657 = vpop.f32.mrb[0].mxu0
        %v658 = vadd.f32 %v420, %v657
        %v659 = vpop.f32.mrb[0].mxu0
        %v660 = vadd.f32 %v425, %v659
        %v661 = vpop.f32.mrb[0].mxu0
        %v662 = vadd.f32 %v425, %v661
        %663 = vdwg.mxu0
        %v664 = vmax.f32 %v626, 0.0
        %v665 = vmax.f32 %v628, 0.0
        %v666 = vmax.f32 %v630, 0.0
        %v667 = vmax.f32 %v632, 0.0
        %v668 = vmax.f32 %v636, 0.0
        %v669 = vmax.f32 %v638, 0.0
        %v670 = vmax.f32 %v640, 0.0
        %v671 = vmax.f32 %v642, 0.0
        %v672 = vmax.f32 %v646, 0.0
        %v673 = vmax.f32 %v648, 0.0
        %v674 = vmax.f32 %v650, 0.0
        %v675 = vmax.f32 %v652, 0.0
        %v676 = vmax.f32 %v656, 0.0
        %v677 = vmax.f32 %v658, 0.0
        %v678 = vmax.f32 %v660, 0.0
        %v679 = vmax.f32 %v662, 0.0
        %v680 = vpack.c.bf16 %v666, %v664
        %v681 = vpack.c.bf16 %v667, %v665
        %v682 = vpack.c.bf16 %v670, %v668
        %v683 = vpack.c.bf16 %v671, %v669
        %v684 = vpack.c.bf16 %v674, %v672
        %v685 = vpack.c.bf16 %v675, %v673
        %v686 = vpack.c.bf16 %v678, %v676
        %v687 = vpack.c.bf16 %v679, %v677
        %vm688 = vcmask 523264
        %v690 = vsel %vm688, %v354, 0
        %692 = vmatprep.subr.bf16.mxu0 %v681
        %693 = vmatpush1.bf16.msra.mxu0 %v680
        %694 = vmatprep.subr.bf16.mxu0 %v683
        %695 = vmatpush1.bf16.msra.mxu0 %v682
        %696 = vmatprep.subr.bf16.mxu0 %v685
        %697 = vmatpush1.bf16.msra.mxu0 %v684
        %698 = vmatprep.subr.bf16.mxu0 %v687
        %699 = vmatpush1.bf16.msra.mxu0 %v686
        %700 = vmatprep.subr.bf16.mxu0 0
        %701 = vmatpush1.bf16.msra.mxu0 0
        %702 = vmatprep.subr.bf16.mxu0 0
        %703 = vmatpush1.bf16.msra.mxu0 0
        %704 = vmatprep.subr.bf16.mxu0 0
        %705 = vmatpush1.bf16.msra.mxu0 0
        %706 = vmatprep.subr.bf16.mxu0 0
        %707 = vmatpush1.bf16.msra.mxu0 0
        %708 = vmatprep.subr.bf16.mxu0 0
        %709 = vmatpush1.bf16.msra.mxu0 0
        %710 = vmatprep.subr.bf16.mxu0 0
        %711 = vmatpush1.bf16.msra.mxu0 0
        %712 = vmatprep.subr.bf16.mxu0 0
        %713 = vmatpush1.bf16.msra.mxu0 0
        %714 = vmatprep.subr.bf16.mxu0 0
        %715 = vmatpush1.bf16.msra.mxu0 0
        %716 = vmatprep.subr.bf16.mxu0 0
        %717 = vmatpush1.bf16.msra.mxu0 0
        %718 = vmatprep.subr.bf16.mxu0 0
        %719 = vmatpush1.bf16.msra.mxu0 0
        %720 = vmatprep.subr.bf16.mxu0 0
        %721 = vmatpush1.bf16.msra.mxu0 0
        %722 = vmatprep.subr.bf16.mxu0 0
        %723 = vmatpush1.bf16.msra.mxu0 0
        %724 = vmatprep.mubr.bf16.mxu0 0
        %725 = vmatmul.mubr.bf16.gmra.mrb[0].mxu0 %v690
        %v726 = vpop.f32.mrb[0].mxu0
        %v727 = vadd.f32 %v431, %v726
        %v728 = vpop.f32.mrb[0].mxu0
        %v729 = vadd.f32 %v431, %v728
        %v730 = vpop.f32.mrb[0].mxu0
        %v731 = vpop.f32.mrb[0].mxu0
        %732 = vdwg.mxu0
        %v733 = vld [vmem:[%s332] sm:$0xff]
        %v734 = vld [vmem:[%s332 + $0x8] sm:$0xff]
        %v735 = vadd.f32 %v733, %v727
        %v736 = vadd.f32 %v734, %v729
        %737 = vst [vmem:[%s323] sm:$0xff] %v735
        %738 = vst [vmem:[%s323 + $0x8] sm:$0xff] %v736
        %s739 = sand.u32 %s219, 1
        %s740 = scalar_lea.sflag [#allocation3], %s739
        %s741 = sand.u32 %s219, 1
        %s742 = smul.addr %s741, 16
        %s743 = scalar_lea.vmem [#allocation2], %s742
        // Predicated region
        $region53: #{tpu_custom_call.1} parent=51 // pred_check
          %p744 = pneg %p229
        $region54: #{tpu_custom_call.1} parent=51 // pred_check_branch
          %746 = sbr.rel (%p744) target = $region56
        $region55: #{tpu_custom_call.1} parent=51 // pred_region
          %s747 = smul.u32 2, %s27
          %s749 = ssub.s32 256, 256
          %750 = vsyncadd %s740, %s749
          %s751 = smul.addr %s26, 2
          %s752 = sadd.s32 %s747, %s751
          %s753 = smul.addr %s752, 128
          %s754 = scalar_lea.hbm %s8, %s753
          %s756 = sshll.u32 %s743, 4
          %s757 = int_to_ptr.vmem [resolvable:$true] %s756
          %759 = dma.vmem_to_hbm [thread:$0]  %s757, 256, %s754, %s740
        $region56: #{tpu_custom_call.1} parent=51 // pred_fallthru
          _
      $region52: #{tpu_custom_call.1} parent=5 // pred_fallthru
        _
      %p760 = scmp.le.s32.totalorder 2, %s17
      // Predicated region
      $region57: #{tpu_custom_call.1} parent=5 // pred_check
        %p761 = pneg %p760
      $region58: #{tpu_custom_call.1} parent=5 // pred_check_branch
        %763 = sbr.rel (%p761) target = $region60
      $region59: #{tpu_custom_call.1} parent=5 // pred_region
        %s764 = ssub.s32 %s17, 2
        // Predicated region
        $region61: #{tpu_custom_call.1} parent=59 // pred_check
          %p765 = pneg %p235
        $region62: #{tpu_custom_call.1} parent=59 // pred_check_branch
          %767 = sbr.rel (%p765) target = $region64
        $region63: #{tpu_custom_call.1} parent=59 // pred_region
          %s768 = sand.u32 %s220, 1
          %s769 = scalar_lea.sflag [#allocation3], %s768
          %s770 = sand.u32 %s220, 1
          %s771 = smul.addr %s770, 16
          %s772 = scalar_lea.vmem [#allocation2], %s771
          %773 = dma.done %s769, 256
        $region64: #{tpu_custom_call.1} parent=59 // pred_fallthru
          _
      $region60: #{tpu_custom_call.1} parent=5 // pred_fallthru
        _
    $region6: #{tpu_custom_call.1} parent=1 // loop_footer
      %s21 = sadd.s32 1, %s17
    $region7: #{tpu_custom_call.1} parent=1 // loop_footer_branch
      %16 = sbr.rel target = $region3
    $region8: #{tpu_custom_call.1} parent=1 // loop_exit
      _
    %774 = vsyncpa [#allocation3], 1
    %s775 = scalar_lea.sflag [#allocation3], 1
    %776 = vsyncpa %s775, 1

</llo_original>
